<compile_context>
chip_gen: v7x
topology: tpu7x:2x2x1
jax: 0.10.0
libtpu: 0.0.40
codegen_flags: <defaults>
</compile_context>

<pallas_src>
import functools

import jax
import jax.numpy as jnp
from jax.experimental import pallas as pl
from jax.experimental.pallas import tpu as pltpu


def _round_up(v, m):
    return ((v + m - 1) // m) * m


def _largest_tile(total, cap, quantum):
    """Largest t dividing `total` with t <= cap and (t == total or t % quantum == 0)."""
    cap = max(1, min(cap, total))
    for t in range(cap, 0, -1):
        if total % t == 0 and (t == total or t % quantum == 0):
            return t
    return total  # fallback: full dim is always a legal tile


def _cls_head_ase_kernel(x_ref, w_head_ref, w_fc_t_ref, b_cat_ref,
                         logits_ref, extra_ref,
                         max_acc, sum_acc,
                         *, H_PAD, NCLS_PAD, N_total):
    k = pl.program_id(1)

    # ---- init pooled accumulators on first N step ----
    @pl.when(k == 0)
    def _():
        max_acc[...] = jnp.full_like(max_acc, -jnp.inf)
        sum_acc[...] = jnp.zeros_like(sum_acc)

    # ---- fused max / sum pooling over this (Bt, block_n, C) chunk ----
    x = x_ref[...].astype(jnp.float32)                       # widen (bf16 ok)
    max_acc[...] = jnp.maximum(max_acc[...], jnp.max(x, axis=1))
    sum_acc[...] = sum_acc[...] + jnp.sum(x, axis=1)

    # ---- head + fc + argmax-mask tail, only once per batch tile ----
    @pl.when(k == pl.num_programs(1) - 1)
    def _():
        g_max = max_acc[...]                                  # (Bt, C) f32
        g_avg = sum_acc[...] * (1.0 / N_total)                # (Bt, C) f32
        g = jnp.concatenate([g_max, g_avg], axis=1).astype(jnp.bfloat16)  # (Bt, 2C)

        b_head = b_cat_ref[:, :H_PAD]                         # (1, H_PAD) f32
        b_fc = b_cat_ref[:, H_PAD:H_PAD + NCLS_PAD]           # (1, NCLS_PAD) f32 (-1e30 pad)

        # Linear(2C, H) + ReLU (dropout = identity at eval); one K=2C MXU call.
        feat = jnp.dot(g, w_head_ref[...],
                       preferred_element_type=jnp.float32) + b_head
        feat = jnp.maximum(feat, 0.0)                         # (Bt, H_PAD) f32
        feat_bf = feat.astype(jnp.bfloat16)

        # logits_extra = feat @ W_fc^T + b_fc
        extra = jnp.dot(feat_bf, w_fc_t_ref[...],
                        preferred_element_type=jnp.float32) + b_fc   # (Bt, NCLS_PAD)

        # pred_label = argmax (first maximal index, torch semantics).
        # TODO(synk): rows containing NaN give an all-zero mask here (torch.argmax
        # would pick a NaN index); acceptable for well-formed logits.
        row_max = jnp.max(extra, axis=1, keepdims=True)
        col = jax.lax.broadcasted_iota(jnp.int32, extra.shape, 1)
        first_idx = jnp.min(jnp.where(extra == row_max, col, NCLS_PAD),
                            axis=1, keepdims=True)            # (Bt, 1)
        onehot = (col == first_idx).astype(jnp.bfloat16)       # (Bt, NCLS_PAD)

        # mask = fc.weight[pred, :] as one-hot @ W_fc (rhs-transposed contraction
        # of w_fc_t over the class axis -> no extra resident weight copy).
        mask = jax.lax.dot_general(
            onehot, w_fc_t_ref[...],
            dimension_numbers=(((1,), (1,)), ((), ())),
            preferred_element_type=jnp.float32)                # (Bt, H_PAD) f32

        # logits = (feat * mask) @ W_fc^T + b_fc
        feat2 = (feat * mask).astype(jnp.bfloat16)
        logits = jnp.dot(feat2, w_fc_t_ref[...],
                         preferred_element_type=jnp.float32) + b_fc

        logits_ref[...] = logits.astype(logits_ref.dtype)
        extra_ref[...] = extra.astype(extra_ref.dtype)


def cls_head_ase_forward(x, w_head, b_head, w_fc, b_fc, *,
                         block_b=None, block_n=None,
                         x_vmem_budget_bytes=8 << 20):
    """Eval-mode ClsHead_ASE with cls_feat='max,avg'.

    x      : [B, N, C] f32 or bf16 per-point features
    w_head : [2C, H]   head Linear weight (x @ W convention)
    b_head : [H]
    w_fc   : [ncls, H] fc weight, torch layout (rows = classes)
    b_fc   : [ncls]
    Returns (logits, logits_extra), each [B, ncls] f32.
    """
    B, N, C = x.shape
    H = w_head.shape[1]
    ncls = w_fc.shape[0]
    assert w_head.shape[0] == 2 * C

    H_PAD = _round_up(H, 128)                  # lane-aligned feat / bias slices
    NCLS_PAD = _round_up(ncls, 128)            # lane-dense outputs
    x_bytes_per_elem = x.dtype.itemsize

    # ---- batch tile: keep >= 2 tiles for the v7x megacore when B allows it,
    # and bound the x double-buffer by the VMEM budget (even at block_n == 8).
    if block_b is None:
        cap_b = B // 2 if B >= 16 else B
        cap_b = min(cap_b, max(8, x_vmem_budget_bytes // (2 * 8 * C * x_bytes_per_elem)))
        block_b = _largest_tile(B, cap_b, 8)
    assert B % block_b == 0
    nb = B // block_b

    # ---- N tile: largest divisor of N that keeps 2 x-buffers in budget.
    if block_n is None:
        per_buf = max(1, x_vmem_budget_bytes // 2)
        cap_n = min(N, max(8, per_buf // (block_b * C * x_bytes_per_elem)))
        block_n = _largest_tile(N, cap_n, 8)
    assert N % block_n == 0
    nk = N // block_n

    bf = jnp.bfloat16
    # Head weight, padded to H_PAD output columns (zeros).
    w_head_bf = jnp.zeros((2 * C, H_PAD), bf).at[:, :H].set(w_head.astype(bf))
    # fc weight as (H_PAD, NCLS_PAD); padded rows/cols are zero.
    w_fc_t = jnp.zeros((H_PAD, NCLS_PAD), bf).at[:H, :ncls].set(w_fc.T.astype(bf))
    # Padded classes get -1e30 bias so they can never win the in-kernel argmax.
    b_head_pad = jnp.zeros((1, H_PAD), jnp.float32).at[0, :H].set(b_head)
    b_fc_pad = jnp.full((1, NCLS_PAD), -1e30, jnp.float32).at[0, :ncls].set(b_fc)
    b_cat = jnp.concatenate([b_head_pad, b_fc_pad], axis=1)   # (1, H_PAD+NCLS_PAD)

    kernel = functools.partial(_cls_head_ase_kernel,
                               H_PAD=H_PAD, NCLS_PAD=NCLS_PAD, N_total=N)

    def full_spec(a):
        nd = a.ndim
        return pl.BlockSpec(a.shape, lambda i, k, nd=nd: (0,) * nd)

    # Explicit scoped-VMEM limit sized from the actual buffers (+ slack),
    # so default per-generation scoped limits never bite.
    x_buf = 2 * block_b * block_n * C * x_bytes_per_elem
    w_buf = 2 * (w_head_bf.size * 2 + w_fc_t.size * 2 + b_cat.size * 4)
    out_buf = 2 * 2 * block_b * NCLS_PAD * 4
    scratch_buf = 2 * block_b * max(C, 128) * 4
    need = x_buf + w_buf + out_buf + scratch_buf
    vmem_limit = int(min(64 << 20, max(32 << 20, need + (8 << 20))))

    logits_pad, extra_pad = pl.pallas_call(
        kernel,
        out_shape=(jax.ShapeDtypeStruct((B, NCLS_PAD), jnp.float32),
                   jax.ShapeDtypeStruct((B, NCLS_PAD), jnp.float32)),
        grid_spec=pltpu.PrefetchScalarGridSpec(
            num_scalar_prefetch=0,
            grid=(nb, nk),                                      # (batch, N-reduction)
            in_specs=[
                pl.BlockSpec((block_b, block_n, C), lambda i, k: (i, k, 0)),
                full_spec(w_head_bf),     # constant index_map -> resident weights
                full_spec(w_fc_t),
                full_spec(b_cat),
            ],
            out_specs=[
                pl.BlockSpec((block_b, NCLS_PAD), lambda i, k: (i, 0)),
                pl.BlockSpec((block_b, NCLS_PAD), lambda i, k: (i, 0)),
            ],
            scratch_shapes=[
                pltpu.VMEM((block_b, C), jnp.float32),          # running max
                pltpu.VMEM((block_b, C), jnp.float32),          # running sum
            ],
        ),
        compiler_params=pltpu.CompilerParams(
            dimension_semantics=("parallel", "arbitrary"),
            vmem_limit_bytes=vmem_limit,
        ),
    )(x, w_head_bf, w_fc_t, b_cat)

    return logits_pad[:, :ncls], extra_pad[:, :ncls]


def reference_forward(x, w_head, b_head, w_fc, b_fc):
    """Pure-JAX eval-mode ClsHead_ASE (cls_feat='max,avg'), mirroring the
    kernel's bf16-operand / f32-accumulate matmuls."""
    bf = jnp.bfloat16
    g = jnp.concatenate([jnp.max(x, axis=1), jnp.mean(x, axis=1)], axis=1)
    feat = jnp.dot(g.astype(bf), w_head.astype(bf),
                   preferred_element_type=jnp.float32) + b_head
    feat = jnp.maximum(feat, 0.0)
    wt = w_fc.astype(bf)                                       # (ncls, H)
    extra = jnp.dot(feat.astype(bf), wt.T,
                    preferred_element_type=jnp.float32) + b_fc
    pred = jnp.argmax(extra, axis=1)
    mask = wt[pred].astype(jnp.float32)
    feat2 = feat * mask
    logits = jnp.dot(feat2.astype(bf), wt.T,
                     preferred_element_type=jnp.float32) + b_fc
    return logits, extra


if __name__ == "__main__":
    # TODO(synk): training-mode branch (active dropout, gt/fake-label weight
    # mixing) is train-time glue and is not part of this eval-mode kernel.
    key = jax.random.PRNGKey(0)
    kx, kw1, kb1, kw2, kb2 = jax.random.split(key, 5)

    B, N, C, H, NCLS = 8, 64, 64, 256, 16
    x = jax.random.normal(kx, (B, N, C), jnp.float32)    # per-point encoder features

    w_head = jax.random.normal(kw1, (2 * C, H), jnp.float32) / jnp.sqrt(2.0 * C)
    b_head = 0.01 * jax.random.normal(kb1, (H,), jnp.float32)
    w_fc = jax.random.normal(kw2, (NCLS, H), jnp.float32) / jnp.sqrt(float(H))
    b_fc = 0.01 * jax.random.normal(kb2, (NCLS,), jnp.float32)

    logits, extra = cls_head_ase_forward(x, w_head, b_head, w_fc, b_fc)
    logits, extra = jax.block_until_ready((logits, extra))

    ref_logits, ref_extra = reference_forward(x, w_head, b_head, w_fc, b_fc)

    assert logits.shape == (B, NCLS) and extra.shape == (B, NCLS)
    assert jnp.allclose(extra, ref_extra, atol=2e-2, rtol=2e-2)
    assert jnp.allclose(logits, ref_logits, atol=2e-2, rtol=2e-2)

    print("KERNEL_OK")
</pallas_src>

<mosaic_0001>
module attributes {stable_mosaic.version = 11 : i64} {
  func.func @_cls_head_ase_kernel(%arg0: i32, %arg1: i32, %arg2: memref<8x64x64xf32, #tpu.memory_space<vmem>>, %arg3: memref<128x256xbf16, #tpu.memory_space<vmem>>, %arg4: memref<256x128xbf16, #tpu.memory_space<vmem>>, %arg5: memref<1x384xf32, #tpu.memory_space<vmem>>, %arg6: memref<8x128xf32, #tpu.memory_space<vmem>>, %arg7: memref<8x128xf32, #tpu.memory_space<vmem>>, %arg8: memref<8x64xf32, #tpu.memory_space<vmem>>, %arg9: memref<8x64xf32, #tpu.memory_space<vmem>>) attributes {dimension_semantics = [#tpu.dimension_semantics<parallel>, #tpu.dimension_semantics<arbitrary>], iteration_bounds = array<i64: 1, 1>, scalar_prefetch = 0 : i64, scratch_operands = 2 : i64, tpu.core_type = #tpu.core_type<tc>, window_params = [{transform_indices = @transform_0, window_bounds = array<i64: 8, 64, 64>}, {pipeline_mode = #tpu.pipeline_mode<synchronous>, transform_indices = @transform_1, window_bounds = array<i64: 128, 256>}, {pipeline_mode = #tpu.pipeline_mode<synchronous>, transform_indices = @transform_2, window_bounds = array<i64: 256, 128>}, {pipeline_mode = #tpu.pipeline_mode<synchronous>, transform_indices = @transform_3, window_bounds = array<i64: 1, 384>}, {transform_indices = @transform_4, window_bounds = array<i64: 8, 128>}, {transform_indices = @transform_5, window_bounds = array<i64: 8, 128>}]} {
    %c0_i32 = arith.constant 0 : i32
    %0 = arith.cmpi eq, %arg1, %c0_i32 : i32
    %1 = arith.extui %0 : i1 to i32
    %c0_i32_0 = arith.constant 0 : i32
    %2 = arith.cmpi ne, %1, %c0_i32_0 : i32
    scf.if %2 {
      %cst_14 = arith.constant 0xFF800000 : f32
      %15 = vector.broadcast %cst_14 : f32 to vector<8x64xf32>
      %c0_15 = arith.constant 0 : index
      %c0_16 = arith.constant 0 : index
      %16 = vector.load %arg8[%c0_15, %c0_16] : memref<8x64xf32, #tpu.memory_space<vmem>>, vector<8x64xf32>
      tpu.vector_store %arg8[%c0_15, %c0_16], %15 {strides = array<i32>} : memref<8x64xf32, #tpu.memory_space<vmem>>, vector<8x64xf32>,
      %cst_17 = arith.constant 0.000000e+00 : f32
      %17 = vector.broadcast %cst_17 : f32 to vector<8x64xf32>
      %c0_18 = arith.constant 0 : index
      %c0_19 = arith.constant 0 : index
      %18 = vector.load %arg9[%c0_18, %c0_19] : memref<8x64xf32, #tpu.memory_space<vmem>>, vector<8x64xf32>
      tpu.vector_store %arg9[%c0_18, %c0_19], %17 {strides = array<i32>} : memref<8x64xf32, #tpu.memory_space<vmem>>, vector<8x64xf32>,
    } else {
    }
    %c0 = arith.constant 0 : index
    %c0_1 = arith.constant 0 : index
    %c0_2 = arith.constant 0 : index
    %3 = vector.load %arg2[%c0, %c0_1, %c0_2] : memref<8x64x64xf32, #tpu.memory_space<vmem>>, vector<8x64x64xf32>
    %c0_3 = arith.constant 0 : index
    %c0_4 = arith.constant 0 : index
    %4 = vector.load %arg8[%c0_3, %c0_4] : memref<8x64xf32, #tpu.memory_space<vmem>>, vector<8x64xf32>
    %cst = arith.constant dense<0xFF800000> : vector<8x64xf32>
    %5 = vector.multi_reduction <maximumf>, %3, %cst [1] : vector<8x64x64xf32> to vector<8x64xf32>
    %6 = arith.maximumf %4, %5 : vector<8x64xf32>
    %c0_5 = arith.constant 0 : index
    %c0_6 = arith.constant 0 : index
    %7 = vector.load %arg8[%c0_5, %c0_6] : memref<8x64xf32, #tpu.memory_space<vmem>>, vector<8x64xf32>
    tpu.vector_store %arg8[%c0_5, %c0_6], %6 {strides = array<i32>} : memref<8x64xf32, #tpu.memory_space<vmem>>, vector<8x64xf32>,
    %c0_7 = arith.constant 0 : index
    %c0_8 = arith.constant 0 : index
    %8 = vector.load %arg9[%c0_7, %c0_8] : memref<8x64xf32, #tpu.memory_space<vmem>>, vector<8x64xf32>
    %cst_9 = arith.constant dense<0.000000e+00> : vector<8x64xf32>
    %9 = vector.multi_reduction <add>, %3, %cst_9 [1] : vector<8x64x64xf32> to vector<8x64xf32>
    %10 = arith.addf %8, %9 : vector<8x64xf32>
    %c0_10 = arith.constant 0 : index
    %c0_11 = arith.constant 0 : index
    %11 = vector.load %arg9[%c0_10, %c0_11] : memref<8x64xf32, #tpu.memory_space<vmem>>, vector<8x64xf32>
    tpu.vector_store %arg9[%c0_10, %c0_11], %10 {strides = array<i32>} : memref<8x64xf32, #tpu.memory_space<vmem>>, vector<8x64xf32>,
    %c0_i32_12 = arith.constant 0 : i32
    %12 = arith.cmpi eq, %arg1, %c0_i32_12 : i32
    %13 = arith.extui %12 : i1 to i32
    %c0_i32_13 = arith.constant 0 : i32
    %14 = arith.cmpi ne, %13, %c0_i32_13 : i32
    scf.if %14 {
      %c0_14 = arith.constant 0 : index
      %c0_15 = arith.constant 0 : index
      %15 = vector.load %arg8[%c0_14, %c0_15] : memref<8x64xf32, #tpu.memory_space<vmem>>, vector<8x64xf32>
      %c0_16 = arith.constant 0 : index
      %c0_17 = arith.constant 0 : index
      %16 = vector.load %arg9[%c0_16, %c0_17] : memref<8x64xf32, #tpu.memory_space<vmem>>, vector<8x64xf32>
      %cst_18 = arith.constant 1.562500e-02 : f32
      %17 = vector.broadcast %cst_18 : f32 to vector<8x64xf32>
      %18 = arith.mulf %16, %17 : vector<8x64xf32>
      %19 = tpu.concatenate %15, %18 in 1 : vector<8x64xf32>, vector<8x64xf32> -> vector<8x128xf32>
      %20 = arith.truncf %19 : vector<8x128xf32> to vector<8x128xbf16>
      %c0_19 = arith.constant 0 : index
      %c0_20 = arith.constant 0 : index
      %21 = vector.load %arg5[%c0_19, %c0_20] : memref<1x384xf32, #tpu.memory_space<vmem>>, vector<1x256xf32>
      %c0_21 = arith.constant 0 : index
      %c256 = arith.constant 256 : index
      %22 = vector.load %arg5[%c0_21, %c256] : memref<1x384xf32, #tpu.memory_space<vmem>>, vector<1x128xf32>
      %c0_22 = arith.constant 0 : index
      %c0_23 = arith.constant 0 : index
      %23 = vector.load %arg3[%c0_22, %c0_23] : memref<128x256xbf16, #tpu.memory_space<vmem>>, vector<128x256xbf16>
      %cst_24 = arith.constant dense<0.000000e+00> : vector<8x256xf32>
      %24 = tpu.matmul %20, %23, %cst_24 {dimension_numbers = #tpu.dot_dimension_numbers<[1], [0], [0], [1], [0, 0, 1, 1], [], []>} : vector<8x128xbf16>, vector<128x256xbf16>, vector<8x256xf32> -> vector<8x256xf32>
      %25 = vector.broadcast %21 : vector<1x256xf32> to vector<8x256xf32>
      %26 = arith.addf %24, %25 : vector<8x256xf32>
      %cst_25 = arith.constant 0.000000e+00 : f32
      %27 = vector.broadcast %cst_25 : f32 to vector<8x256xf32>
      %28 = arith.maximumf %26, %27 : vector<8x256xf32>
      %29 = arith.truncf %28 : vector<8x256xf32> to vector<8x256xbf16>
      %c0_26 = arith.constant 0 : index
      %c0_27 = arith.constant 0 : index
      %30 = vector.load %arg4[%c0_26, %c0_27] : memref<256x128xbf16, #tpu.memory_space<vmem>>, vector<256x128xbf16>
      %cst_28 = arith.constant dense<0.000000e+00> : vector<8x128xf32>
      %31 = tpu.matmul %29, %30, %cst_28 {dimension_numbers = #tpu.dot_dimension_numbers<[1], [0], [0], [1], [0, 0, 1, 1], [], []>} : vector<8x256xbf16>, vector<256x128xbf16>, vector<8x128xf32> -> vector<8x128xf32>
      %32 = vector.broadcast %22 : vector<1x128xf32> to vector<8x128xf32>
      %33 = arith.addf %31, %32 : vector<8x128xf32>
      %cst_29 = arith.constant dense<0xFF800000> : vector<8xf32>
      %34 = vector.multi_reduction <maximumf>, %33, %cst_29 [1] : vector<8x128xf32> to vector<8xf32>
      %35 = vector.shape_cast %34 : vector<8xf32> to vector<8x1xf32>
      %36 = tpu.iota {dimensions = array<i32: 1>} : vector<8x128xi32>
      %37 = vector.broadcast %35 : vector<8x1xf32> to vector<8x128xf32>
      %38 = arith.cmpf oeq, %33, %37 : vector<8x128xf32>
      %c128_i32 = arith.constant 128 : i32
      %39 = vector.broadcast %c128_i32 : i32 to vector<8x128xi32>
      %40 = arith.select %38, %36, %39 : vector<8x128xi1>, vector<8x128xi32>
      %cst_30 = arith.constant dense<2147483647> : vector<8xi32>
      %41 = vector.multi_reduction <minsi>, %40, %cst_30 [1] : vector<8x128xi32> to vector<8xi32>
      %42 = vector.shape_cast %41 : vector<8xi32> to vector<8x1xi32>
      %43 = vector.broadcast %42 : vector<8x1xi32> to vector<8x128xi32>
      %44 = arith.cmpi eq, %36, %43 : vector<8x128xi32>
      %45 = arith.extui %44 : vector<8x128xi1> to vector<8x128xi32>
      %46 = arith.sitofp %45 : vector<8x128xi32> to vector<8x128xf32>
      %47 = arith.truncf %46 : vector<8x128xf32> to vector<8x128xbf16>
      %c0_31 = arith.constant 0 : index
      %c0_32 = arith.constant 0 : index
      %48 = vector.load %arg4[%c0_31, %c0_32] : memref<256x128xbf16, #tpu.memory_space<vmem>>, vector<256x128xbf16>
      %cst_33 = arith.constant dense<0.000000e+00> : vector<8x256xf32>
      %49 = tpu.matmul %47, %48, %cst_33 {dimension_numbers = #tpu.dot_dimension_numbers<[1], [1], [0], [0], [0, 0, 1, 0], [], []>} : vector<8x128xbf16>, vector<256x128xbf16>, vector<8x256xf32> -> vector<8x256xf32>
      %50 = arith.mulf %28, %49 : vector<8x256xf32>
      %51 = arith.truncf %50 : vector<8x256xf32> to vector<8x256xbf16>
      %c0_34 = arith.constant 0 : index
      %c0_35 = arith.constant 0 : index
      %52 = vector.load %arg4[%c0_34, %c0_35] : memref<256x128xbf16, #tpu.memory_space<vmem>>, vector<256x128xbf16>
      %cst_36 = arith.constant dense<0.000000e+00> : vector<8x128xf32>
      %53 = tpu.matmul %51, %52, %cst_36 {dimension_numbers = #tpu.dot_dimension_numbers<[1], [0], [0], [1], [0, 0, 1, 1], [], []>} : vector<8x256xbf16>, vector<256x128xbf16>, vector<8x128xf32> -> vector<8x128xf32>
      %54 = vector.broadcast %22 : vector<1x128xf32> to vector<8x128xf32>
      %55 = arith.addf %53, %54 : vector<8x128xf32>
      %c0_37 = arith.constant 0 : index
      %c0_38 = arith.constant 0 : index
      %56 = vector.load %arg6[%c0_37, %c0_38] : memref<8x128xf32, #tpu.memory_space<vmem>>, vector<8x128xf32>
      tpu.vector_store %arg6[%c0_37, %c0_38], %55 {strides = array<i32>} : memref<8x128xf32, #tpu.memory_space<vmem>>, vector<8x128xf32>,
      %c0_39 = arith.constant 0 : index
      %c0_40 = arith.constant 0 : index
      %57 = vector.load %arg7[%c0_39, %c0_40] : memref<8x128xf32, #tpu.memory_space<vmem>>, vector<8x128xf32>
      tpu.vector_store %arg7[%c0_39, %c0_40], %33 {strides = array<i32>} : memref<8x128xf32, #tpu.memory_space<vmem>>, vector<8x128xf32>,
    } else {
    }
    return
  }
  func.func @transform_0(%arg0: i32, %arg1: i32) -> (i32, i32, i32) {
    %c0_i32 = arith.constant 0 : i32
    %c0_i32_0 = arith.constant 0 : i32
    return %arg0, %arg1, %c0_i32 : i32, i32, i32
  }
  func.func @transform_1(%arg0: i32, %arg1: i32) -> (i32, i32) {
    %c0_i32 = arith.constant 0 : i32
    %c0_i32_0 = arith.constant 0 : i32
    %c0_i32_1 = arith.constant 0 : i32
    return %c0_i32, %c0_i32_0 : i32, i32
  }
  func.func @transform_2(%arg0: i32, %arg1: i32) -> (i32, i32) {
    %c0_i32 = arith.constant 0 : i32
    %c0_i32_0 = arith.constant 0 : i32
    %c0_i32_1 = arith.constant 0 : i32
    return %c0_i32, %c0_i32_0 : i32, i32
  }
  func.func @transform_3(%arg0: i32, %arg1: i32) -> (i32, i32) {
    %c0_i32 = arith.constant 0 : i32
    %c0_i32_0 = arith.constant 0 : i32
    %c0_i32_1 = arith.constant 0 : i32
    return %c0_i32, %c0_i32_0 : i32, i32
  }
  func.func @transform_4(%arg0: i32, %arg1: i32) -> (i32, i32) {
    %c0_i32 = arith.constant 0 : i32
    %c0_i32_0 = arith.constant 0 : i32
    return %arg0, %c0_i32 : i32, i32
  }
  func.func @transform_5(%arg0: i32, %arg1: i32) -> (i32, i32) {
    %c0_i32 = arith.constant 0 : i32
    %c0_i32_0 = arith.constant 0 : i32
    return %arg0, %c0_i32 : i32, i32
  }
}

</mosaic_0001>

<llo_original>
// kernel: tpu_custom_call.1
$region0: #{tpu_custom_call.1}
  #allocation0 [shape = 'u32[]', space=smem, size = 0x4, offset = 0x4, fixed_abs, tag = 'smem constant byte address 0x4 - core index']
  #allocation1 [shape = 'u32[144,128]{1,0:T(1,128)}', space=vmem, size = 0x12000, scoped, tag = 'internal scratch']
  #allocation2 [shape = 'f32[8,64]{1,0:T(8,128)}', space=vmem, size = 0x1000, scoped, tag = 'scratch operand']
  #allocation3 [shape = 'f32[8,64]{1,0:T(8,128)}', space=vmem, size = 0x1000, scoped, tag = 'scratch operand']
  %s0 = inlined_call_operand.hbm [shape: f32[8,64,64], index: 0, kind: input, shape index: {}]
  %s1 = inlined_call_operand.hbm [shape: bf16[128,256], index: 1, kind: input, shape index: {}]
  %s2 = inlined_call_operand.hbm [shape: bf16[256,128], index: 2, kind: input, shape index: {}]
  %s3 = inlined_call_operand.vmem [shape: f32[1,384], index: 3, kind: input, shape index: {}]
  %s4 = inlined_call_operand.hbm [shape: f32[8,128], index: 4, kind: output, shape index: {0}]
  %s5 = inlined_call_operand.hbm [shape: f32[8,128], index: 5, kind: output, shape index: {1}]
  %6 = xla_tuple %s4, %s5
  %s7 = sld [smem:[#allocation0]]
  $region54: #{tpu_custom_call.1} parent=0
    _
  %s9 = ssub.s32 1, %s7
  %s10 = scalar_select 0, %s9, %s7
  $region1: #{tpu_custom_call.1} parent=0
    #allocation4 [shape = 'u8[262144]{0}', space=vmem, size = 0x40000, scoped, tag = 'input window, operand 0, single buffered']
    #allocation5 [shape = 's32[1]{0}', space=sflag, size = 0x4, scoped, tag = 'scoped memory for tpu_custom_call.1']
    #allocation6 [shape = 's32[1]{0}', space=sflag, size = 0x4, scoped, tag = 'scoped memory for tpu_custom_call.1']
    #allocation7 [shape = 'u8[65536]{0}', space=vmem, size = 0x10000, scoped, tag = 'input window, operand 1, single buffered']
    #allocation8 [shape = 's32[1]{0}', space=sflag, size = 0x4, scoped, tag = 'scoped memory for tpu_custom_call.1']
    #allocation9 [shape = 'u8[65536]{0}', space=vmem, size = 0x10000, scoped, tag = 'input window, operand 2, single buffered']
    #allocation10 [shape = 'u8[4096]{0}', space=vmem, size = 0x1000, scoped, tag = 'output window, operand 0, single buffered']
    #allocation11 [shape = 'u8[4096]{0}', space=vmem, size = 0x1000, scoped, tag = 'output window, operand 1, single buffered']
    #allocation12 [shape = 's32[1]{0}', space=sflag, size = 0x4, scoped, tag = 'scoped memory for tpu_custom_call.1']
    %11 = vsyncpa [#allocation5], 0
    %12 = vsyncpa [#allocation8], 0
    %13 = vsyncpa [#allocation6], 0
    %14 = vsyncpa [#allocation12], 0
    // Predicated region
    $region2: #{tpu_custom_call.1} parent=1 // pred_check
      _
    $region3: #{tpu_custom_call.1} parent=1 // pred_check_branch
      %16 = sbr.rel (0) target = $region5
    $region4: #{tpu_custom_call.1} parent=1 // pred_region
      %s18 = ssub.s32 8192, 8192
      %19 = vsyncadd [#allocation5], %s18
      %s20 = sshll.u32 [#allocation4], 4
      %s21 = int_to_ptr.vmem [resolvable:$true] %s20
      %26 = dma.hbm_to_vmem [thread:$0]  %s0, 8192, %s21, [#allocation5], 128, 128, 8
    $region5: #{tpu_custom_call.1} parent=1 // pred_fallthru
      _
    // Predicated region
    $region6: #{tpu_custom_call.1} parent=1 // pred_check
      _
    $region7: #{tpu_custom_call.1} parent=1 // pred_check_branch
      %28 = sbr.rel (0) target = $region9
    $region8: #{tpu_custom_call.1} parent=1 // pred_region
      %s30 = ssub.s32 2048, 2048
      %31 = vsyncadd [#allocation8], %s30
      %s32 = sshll.u32 [#allocation7], 4
      %s33 = int_to_ptr.vmem [resolvable:$true] %s32
      %38 = dma.hbm_to_vmem [thread:$0]  %s1, 2048, %s33, [#allocation8], 128, 128, 8
    $region9: #{tpu_custom_call.1} parent=1 // pred_fallthru
      _
    // Predicated region
    $region10: #{tpu_custom_call.1} parent=1 // pred_check
      _
    $region11: #{tpu_custom_call.1} parent=1 // pred_check_branch
      %40 = sbr.rel (0) target = $region13
    $region12: #{tpu_custom_call.1} parent=1 // pred_region
      %s42 = ssub.s32 2048, 2048
      %43 = vsyncadd [#allocation8], %s42
      %s44 = sshll.u32 [#allocation9], 4
      %s45 = int_to_ptr.vmem [resolvable:$true] %s44
      %50 = dma.hbm_to_vmem [thread:$0]  %s2, 2048, %s45, [#allocation8], 64, 64, 4
    $region13: #{tpu_custom_call.1} parent=1 // pred_fallthru
      _
    // Predicated region
    $region14: #{tpu_custom_call.1} parent=1 // pred_check
      _
    $region15: #{tpu_custom_call.1} parent=1 // pred_check_branch
      %52 = sbr.rel (0) target = $region17
    $region16: #{tpu_custom_call.1} parent=1 // pred_region
      _
    $region17: #{tpu_custom_call.1} parent=1 // pred_fallthru
      _
    // Predicated region
    $region18: #{tpu_custom_call.1} parent=1 // pred_check
      _
    $region19: #{tpu_custom_call.1} parent=1 // pred_check_branch
      %54 = sbr.rel (0) target = $region21
    $region20: #{tpu_custom_call.1} parent=1 // pred_region
      %55 = dma.done [#allocation5], 8192
    $region21: #{tpu_custom_call.1} parent=1 // pred_fallthru
      _
    // Predicated region
    $region22: #{tpu_custom_call.1} parent=1 // pred_check
      _
    $region23: #{tpu_custom_call.1} parent=1 // pred_check_branch
      %57 = sbr.rel (0) target = $region25
    $region24: #{tpu_custom_call.1} parent=1 // pred_region
      %58 = dma.done [#allocation8], 2048
    $region25: #{tpu_custom_call.1} parent=1 // pred_fallthru
      _
    // Predicated region
    $region26: #{tpu_custom_call.1} parent=1 // pred_check
      _
    $region27: #{tpu_custom_call.1} parent=1 // pred_check_branch
      %60 = sbr.rel (0) target = $region29
    $region28: #{tpu_custom_call.1} parent=1 // pred_region
      %61 = dma.done [#allocation8], 2048
    $region29: #{tpu_custom_call.1} parent=1 // pred_fallthru
      _
    %p63 = scmp.eq.s32.totalorder 0, 0
    // Predicated region
    $region30: #{tpu_custom_call.1} parent=1 // pred_check
      %p64 = pneg %p63
    $region31: #{tpu_custom_call.1} parent=1 // pred_check_branch
      %66 = sbr.rel (%p64) target = $region33
    $region32: #{tpu_custom_call.1} parent=1 // pred_region
      %vm67 = vcmask 523264
      %68 = vst.msk [vmem:[#allocation2] sm:$0xff] %vm67, -inf
      %69 = vst.msk [vmem:[#allocation3] sm:$0xff] %vm67, 0.0
    $region33: #{tpu_custom_call.1} parent=1 // pred_fallthru
      _
    %v70 = vld [vmem:[#allocation4] sm:$0xff]
    %v71 = vld [vmem:[#allocation4 + $0x8] sm:$0xff]
    %v72 = vld [vmem:[#allocation4 + $0x10] sm:$0xff]
    %v73 = vld [vmem:[#allocation4 + $0x18] sm:$0xff]
    %v74 = vld [vmem:[#allocation4 + $0x20] sm:$0xff]
    %v75 = vld [vmem:[#allocation4 + $0x28] sm:$0xff]
    %v76 = vld [vmem:[#allocation4 + $0x30] sm:$0xff]
    %v77 = vld [vmem:[#allocation4 + $0x38] sm:$0xff]
    %v78 = vld [vmem:[#allocation4 + $0x40] sm:$0xff]
    %v79 = vld [vmem:[#allocation4 + $0x48] sm:$0xff]
    %v80 = vld [vmem:[#allocation4 + $0x50] sm:$0xff]
    %v81 = vld [vmem:[#allocation4 + $0x58] sm:$0xff]
    %v82 = vld [vmem:[#allocation4 + $0x60] sm:$0xff]
    %v83 = vld [vmem:[#allocation4 + $0x68] sm:$0xff]
    %v84 = vld [vmem:[#allocation4 + $0x70] sm:$0xff]
    %v85 = vld [vmem:[#allocation4 + $0x78] sm:$0xff]
    %v86 = vld [vmem:[#allocation4 + $0x80] sm:$0xff]
    %v87 = vld [vmem:[#allocation4 + $0x88] sm:$0xff]
    %v88 = vld [vmem:[#allocation4 + $0x90] sm:$0xff]
    %v89 = vld [vmem:[#allocation4 + $0x98] sm:$0xff]
    %v90 = vld [vmem:[#allocation4 + $0xa0] sm:$0xff]
    %v91 = vld [vmem:[#allocation4 + $0xa8] sm:$0xff]
    %v92 = vld [vmem:[#allocation4 + $0xb0] sm:$0xff]
    %v93 = vld [vmem:[#allocation4 + $0xb8] sm:$0xff]
    %v94 = vld [vmem:[#allocation4 + $0xc0] sm:$0xff]
    %v95 = vld [vmem:[#allocation4 + $0xc8] sm:$0xff]
    %v96 = vld [vmem:[#allocation4 + $0xd0] sm:$0xff]
    %v97 = vld [vmem:[#allocation4 + $0xd8] sm:$0xff]
    %v98 = vld [vmem:[#allocation4 + $0xe0] sm:$0xff]
    %v99 = vld [vmem:[#allocation4 + $0xe8] sm:$0xff]
    %v100 = vld [vmem:[#allocation4 + $0xf0] sm:$0xff]
    %v101 = vld [vmem:[#allocation4 + $0xf8] sm:$0xff]
    %v102 = vld [vmem:[#allocation4 + $0x100] sm:$0xff]
    %v103 = vld [vmem:[#allocation4 + $0x108] sm:$0xff]
    %v104 = vld [vmem:[#allocation4 + $0x110] sm:$0xff]
    %v105 = vld [vmem:[#allocation4 + $0x118] sm:$0xff]
    %v106 = vld [vmem:[#allocation4 + $0x120] sm:$0xff]
    %v107 = vld [vmem:[#allocation4 + $0x128] sm:$0xff]
    %v108 = vld [vmem:[#allocation4 + $0x130] sm:$0xff]
    %v109 = vld [vmem:[#allocation4 + $0x138] sm:$0xff]
    %v110 = vld [vmem:[#allocation4 + $0x140] sm:$0xff]
    %v111 = vld [vmem:[#allocation4 + $0x148] sm:$0xff]
    %v112 = vld [vmem:[#allocation4 + $0x150] sm:$0xff]
    %v113 = vld [vmem:[#allocation4 + $0x158] sm:$0xff]
    %v114 = vld [vmem:[#allocation4 + $0x160] sm:$0xff]
    %v115 = vld [vmem:[#allocation4 + $0x168] sm:$0xff]
    %v116 = vld [vmem:[#allocation4 + $0x170] sm:$0xff]
    %v117 = vld [vmem:[#allocation4 + $0x178] sm:$0xff]
    %v118 = vld [vmem:[#allocation4 + $0x180] sm:$0xff]
    %v119 = vld [vmem:[#allocation4 + $0x188] sm:$0xff]
    %v120 = vld [vmem:[#allocation4 + $0x190] sm:$0xff]
    %v121 = vld [vmem:[#allocation4 + $0x198] sm:$0xff]
    %v122 = vld [vmem:[#allocation4 + $0x1a0] sm:$0xff]
    %v123 = vld [vmem:[#allocation4 + $0x1a8] sm:$0xff]
    %v124 = vld [vmem:[#allocation4 + $0x1b0] sm:$0xff]
    %v125 = vld [vmem:[#allocation4 + $0x1b8] sm:$0xff]
    %v126 = vld [vmem:[#allocation4 + $0x1c0] sm:$0xff]
    %v127 = vld [vmem:[#allocation4 + $0x1c8] sm:$0xff]
    %v128 = vld [vmem:[#allocation4 + $0x1d0] sm:$0xff]
    %v129 = vld [vmem:[#allocation4 + $0x1d8] sm:$0xff]
    %v130 = vld [vmem:[#allocation4 + $0x1e0] sm:$0xff]
    %v131 = vld [vmem:[#allocation4 + $0x1e8] sm:$0xff]
    %v132 = vld [vmem:[#allocation4 + $0x1f0] sm:$0xff]
    %v133 = vld [vmem:[#allocation4 + $0x1f8] sm:$0xff]
    %v134 = vld [vmem:[#allocation2] sm:$0xff]
    %vm135 = vcmask 523264
    %v136 = vsel %vm135, %v70, -inf
    %v137 = vsel %vm135, %v71, -inf
    %v138 = vmax.f32 %v136, %v137
    %v139 = vsel %vm135, %v72, -inf
    %v140 = vmax.f32 %v138, %v139
    %v141 = vsel %vm135, %v73, -inf
    %v142 = vmax.f32 %v140, %v141
    %v143 = vsel %vm135, %v74, -inf
    %v144 = vmax.f32 %v142, %v143
    %v145 = vsel %vm135, %v75, -inf
    %v146 = vmax.f32 %v144, %v145
    %v147 = vsel %vm135, %v76, -inf
    %v148 = vmax.f32 %v146, %v147
    %v149 = vsel %vm135, %v77, -inf
    %v150 = vmax.f32 %v148, %v149
    %v151 = vrot.slane %v150, 4
    %v152 = vmax.f32 %v150, %v151
    %v153 = vrot.slane %v152, 2
    %v154 = vmax.f32 %v152, %v153
    %v155 = vrot.slane %v154, 1
    %v156 = vmax.f32 %v154, %v155
    %v157 = vsel %vm135, %v78, -inf
    %v158 = vsel %vm135, %v79, -inf
    %v159 = vmax.f32 %v157, %v158
    %v160 = vsel %vm135, %v80, -inf
    %v161 = vmax.f32 %v159, %v160
    %v162 = vsel %vm135, %v81, -inf
    %v163 = vmax.f32 %v161, %v162
    %v164 = vsel %vm135, %v82, -inf
    %v165 = vmax.f32 %v163, %v164
    %v166 = vsel %vm135, %v83, -inf
    %v167 = vmax.f32 %v165, %v166
    %v168 = vsel %vm135, %v84, -inf
    %v169 = vmax.f32 %v167, %v168
    %v170 = vsel %vm135, %v85, -inf
    %v171 = vmax.f32 %v169, %v170
    %v172 = vrot.slane %v171, 4
    %v173 = vmax.f32 %v171, %v172
    %v174 = vrot.slane %v173, 2
    %v175 = vmax.f32 %v173, %v174
    %v176 = vrot.slane %v175, 1
    %v177 = vmax.f32 %v175, %v176
    %v178 = vsel %vm135, %v86, -inf
    %v179 = vsel %vm135, %v87, -inf
    %v180 = vmax.f32 %v178, %v179
    %v181 = vsel %vm135, %v88, -inf
    %v182 = vmax.f32 %v180, %v181
    %v183 = vsel %vm135, %v89, -inf
    %v184 = vmax.f32 %v182, %v183
    %v185 = vsel %vm135, %v90, -inf
    %v186 = vmax.f32 %v184, %v185
    %v187 = vsel %vm135, %v91, -inf
    %v188 = vmax.f32 %v186, %v187
    %v189 = vsel %vm135, %v92, -inf
    %v190 = vmax.f32 %v188, %v189
    %v191 = vsel %vm135, %v93, -inf
    %v192 = vmax.f32 %v190, %v191
    %v193 = vrot.slane %v192, 4
    %v194 = vmax.f32 %v192, %v193
    %v195 = vrot.slane %v194, 2
    %v196 = vmax.f32 %v194, %v195
    %v197 = vrot.slane %v196, 1
    %v198 = vmax.f32 %v196, %v197
    %v199 = vsel %vm135, %v94, -inf
    %v200 = vsel %vm135, %v95, -inf
    %v201 = vmax.f32 %v199, %v200
    %v202 = vsel %vm135, %v96, -inf
    %v203 = vmax.f32 %v201, %v202
    %v204 = vsel %vm135, %v97, -inf
    %v205 = vmax.f32 %v203, %v204
    %v206 = vsel %vm135, %v98, -inf
    %v207 = vmax.f32 %v205, %v206
    %v208 = vsel %vm135, %v99, -inf
    %v209 = vmax.f32 %v207, %v208
    %v210 = vsel %vm135, %v100, -inf
    %v211 = vmax.f32 %v209, %v210
    %v212 = vsel %vm135, %v101, -inf
    %v213 = vmax.f32 %v211, %v212
    %v214 = vrot.slane %v213, 4
    %v215 = vmax.f32 %v213, %v214
    %v216 = vrot.slane %v215, 2
    %v217 = vmax.f32 %v215, %v216
    %v218 = vrot.slane %v217, 1
    %v219 = vmax.f32 %v217, %v218
    %v220 = vsel %vm135, %v102, -inf
    %v221 = vsel %vm135, %v103, -inf
    %v222 = vmax.f32 %v220, %v221
    %v223 = vsel %vm135, %v104, -inf
    %v224 = vmax.f32 %v222, %v223
    %v225 = vsel %vm135, %v105, -inf
    %v226 = vmax.f32 %v224, %v225
    %v227 = vsel %vm135, %v106, -inf
    %v228 = vmax.f32 %v226, %v227
    %v229 = vsel %vm135, %v107, -inf
    %v230 = vmax.f32 %v228, %v229
    %v231 = vsel %vm135, %v108, -inf
    %v232 = vmax.f32 %v230, %v231
    %v233 = vsel %vm135, %v109, -inf
    %v234 = vmax.f32 %v232, %v233
    %v235 = vrot.slane %v234, 4
    %v236 = vmax.f32 %v234, %v235
    %v237 = vrot.slane %v236, 2
    %v238 = vmax.f32 %v236, %v237
    %v239 = vrot.slane %v238, 1
    %v240 = vmax.f32 %v238, %v239
    %v241 = vsel %vm135, %v110, -inf
    %v242 = vsel %vm135, %v111, -inf
    %v243 = vmax.f32 %v241, %v242
    %v244 = vsel %vm135, %v112, -inf
    %v245 = vmax.f32 %v243, %v244
    %v246 = vsel %vm135, %v113, -inf
    %v247 = vmax.f32 %v245, %v246
    %v248 = vsel %vm135, %v114, -inf
    %v249 = vmax.f32 %v247, %v248
    %v250 = vsel %vm135, %v115, -inf
    %v251 = vmax.f32 %v249, %v250
    %v252 = vsel %vm135, %v116, -inf
    %v253 = vmax.f32 %v251, %v252
    %v254 = vsel %vm135, %v117, -inf
    %v255 = vmax.f32 %v253, %v254
    %v256 = vrot.slane %v255, 4
    %v257 = vmax.f32 %v255, %v256
    %v258 = vrot.slane %v257, 2
    %v259 = vmax.f32 %v257, %v258
    %v260 = vrot.slane %v259, 1
    %v261 = vmax.f32 %v259, %v260
    %v262 = vsel %vm135, %v118, -inf
    %v263 = vsel %vm135, %v119, -inf
    %v264 = vmax.f32 %v262, %v263
    %v265 = vsel %vm135, %v120, -inf
    %v266 = vmax.f32 %v264, %v265
    %v267 = vsel %vm135, %v121, -inf
    %v268 = vmax.f32 %v266, %v267
    %v269 = vsel %vm135, %v122, -inf
    %v270 = vmax.f32 %v268, %v269
    %v271 = vsel %vm135, %v123, -inf
    %v272 = vmax.f32 %v270, %v271
    %v273 = vsel %vm135, %v124, -inf
    %v274 = vmax.f32 %v272, %v273
    %v275 = vsel %vm135, %v125, -inf
    %v276 = vmax.f32 %v274, %v275
    %v277 = vrot.slane %v276, 4
    %v278 = vmax.f32 %v276, %v277
    %v279 = vrot.slane %v278, 2
    %v280 = vmax.f32 %v278, %v279
    %v281 = vrot.slane %v280, 1
    %v282 = vmax.f32 %v280, %v281
    %v283 = vsel %vm135, %v126, -inf
    %v284 = vsel %vm135, %v127, -inf
    %v285 = vmax.f32 %v283, %v284
    %v286 = vsel %vm135, %v128, -inf
    %v287 = vmax.f32 %v285, %v286
    %v288 = vsel %vm135, %v129, -inf
    %v289 = vmax.f32 %v287, %v288
    %v290 = vsel %vm135, %v130, -inf
    %v291 = vmax.f32 %v289, %v290
    %v292 = vsel %vm135, %v131, -inf
    %v293 = vmax.f32 %v291, %v292
    %v294 = vsel %vm135, %v132, -inf
    %v295 = vmax.f32 %v293, %v294
    %v296 = vsel %vm135, %v133, -inf
    %v297 = vmax.f32 %v295, %v296
    %v298 = vrot.slane %v297, 4
    %v299 = vmax.f32 %v297, %v298
    %v300 = vrot.slane %v299, 2
    %v301 = vmax.f32 %v299, %v300
    %v302 = vrot.slane %v301, 1
    %v303 = vmax.f32 %v301, %v302
    %vm312 = vcmask 1041409
    %v313 = vsel %vm312, %v177, %v156
    %vm314 = vcmask 1042434
    %v315 = vsel %vm314, %v198, %v313
    %vm316 = vcmask 1043459
    %v317 = vsel %vm316, %v219, %v315
    %vm318 = vcmask 1044484
    %v319 = vsel %vm318, %v240, %v317
    %vm320 = vcmask 1045509
    %v321 = vsel %vm320, %v261, %v319
    %vm322 = vcmask 1046534
    %v323 = vsel %vm322, %v282, %v321
    %vm324 = vcmask 1047559
    %v325 = vsel %vm324, %v303, %v323
    %v327 = vmax.f32 %v134, %v325
    %328 = vst.msk [vmem:[#allocation2] sm:$0xff] %vm135, %v327
    %v329 = vld [vmem:[#allocation3] sm:$0xff]
    %v330 = vsel %vm135, %v70, 0.0
    %v331 = vsel %vm135, %v71, 0.0
    %v332 = vadd.f32 %v330, %v331
    %v333 = vsel %vm135, %v72, 0.0
    %v334 = vadd.f32 %v332, %v333
    %v335 = vsel %vm135, %v73, 0.0
    %v336 = vadd.f32 %v334, %v335
    %v337 = vsel %vm135, %v74, 0.0
    %v338 = vadd.f32 %v336, %v337
    %v339 = vsel %vm135, %v75, 0.0
    %v340 = vadd.f32 %v338, %v339
    %v341 = vsel %vm135, %v76, 0.0
    %v342 = vadd.f32 %v340, %v341
    %v343 = vsel %vm135, %v77, 0.0
    %v344 = vadd.f32 %v342, %v343
    %v345 = vrot.slane %v344, 4
    %v346 = vadd.f32 %v344, %v345
    %v347 = vrot.slane %v346, 2
    %v348 = vadd.f32 %v346, %v347
    %v349 = vrot.slane %v348, 1
    %v350 = vadd.f32 %v348, %v349
    %v351 = vsel %vm135, %v78, 0.0
    %v352 = vsel %vm135, %v79, 0.0
    %v353 = vadd.f32 %v351, %v352
    %v354 = vsel %vm135, %v80, 0.0
    %v355 = vadd.f32 %v353, %v354
    %v356 = vsel %vm135, %v81, 0.0
    %v357 = vadd.f32 %v355, %v356
    %v358 = vsel %vm135, %v82, 0.0
    %v359 = vadd.f32 %v357, %v358
    %v360 = vsel %vm135, %v83, 0.0
    %v361 = vadd.f32 %v359, %v360
    %v362 = vsel %vm135, %v84, 0.0
    %v363 = vadd.f32 %v361, %v362
    %v364 = vsel %vm135, %v85, 0.0
    %v365 = vadd.f32 %v363, %v364
    %v366 = vrot.slane %v365, 4
    %v367 = vadd.f32 %v365, %v366
    %v368 = vrot.slane %v367, 2
    %v369 = vadd.f32 %v367, %v368
    %v370 = vrot.slane %v369, 1
    %v371 = vadd.f32 %v369, %v370
    %v372 = vsel %vm135, %v86, 0.0
    %v373 = vsel %vm135, %v87, 0.0
    %v374 = vadd.f32 %v372, %v373
    %v375 = vsel %vm135, %v88, 0.0
    %v376 = vadd.f32 %v374, %v375
    %v377 = vsel %vm135, %v89, 0.0
    %v378 = vadd.f32 %v376, %v377
    %v379 = vsel %vm135, %v90, 0.0
    %v380 = vadd.f32 %v378, %v379
    %v381 = vsel %vm135, %v91, 0.0
    %v382 = vadd.f32 %v380, %v381
    %v383 = vsel %vm135, %v92, 0.0
    %v384 = vadd.f32 %v382, %v383
    %v385 = vsel %vm135, %v93, 0.0
    %v386 = vadd.f32 %v384, %v385
    %v387 = vrot.slane %v386, 4
    %v388 = vadd.f32 %v386, %v387
    %v389 = vrot.slane %v388, 2
    %v390 = vadd.f32 %v388, %v389
    %v391 = vrot.slane %v390, 1
    %v392 = vadd.f32 %v390, %v391
    %v393 = vsel %vm135, %v94, 0.0
    %v394 = vsel %vm135, %v95, 0.0
    %v395 = vadd.f32 %v393, %v394
    %v396 = vsel %vm135, %v96, 0.0
    %v397 = vadd.f32 %v395, %v396
    %v398 = vsel %vm135, %v97, 0.0
    %v399 = vadd.f32 %v397, %v398
    %v400 = vsel %vm135, %v98, 0.0
    %v401 = vadd.f32 %v399, %v400
    %v402 = vsel %vm135, %v99, 0.0
    %v403 = vadd.f32 %v401, %v402
    %v404 = vsel %vm135, %v100, 0.0
    %v405 = vadd.f32 %v403, %v404
    %v406 = vsel %vm135, %v101, 0.0
    %v407 = vadd.f32 %v405, %v406
    %v408 = vrot.slane %v407, 4
    %v409 = vadd.f32 %v407, %v408
    %v410 = vrot.slane %v409, 2
    %v411 = vadd.f32 %v409, %v410
    %v412 = vrot.slane %v411, 1
    %v413 = vadd.f32 %v411, %v412
    %v414 = vsel %vm135, %v102, 0.0
    %v415 = vsel %vm135, %v103, 0.0
    %v416 = vadd.f32 %v414, %v415
    %v417 = vsel %vm135, %v104, 0.0
    %v418 = vadd.f32 %v416, %v417
    %v419 = vsel %vm135, %v105, 0.0
    %v420 = vadd.f32 %v418, %v419
    %v421 = vsel %vm135, %v106, 0.0
    %v422 = vadd.f32 %v420, %v421
    %v423 = vsel %vm135, %v107, 0.0
    %v424 = vadd.f32 %v422, %v423
    %v425 = vsel %vm135, %v108, 0.0
    %v426 = vadd.f32 %v424, %v425
    %v427 = vsel %vm135, %v109, 0.0
    %v428 = vadd.f32 %v426, %v427
    %v429 = vrot.slane %v428, 4
    %v430 = vadd.f32 %v428, %v429
    %v431 = vrot.slane %v430, 2
    %v432 = vadd.f32 %v430, %v431
    %v433 = vrot.slane %v432, 1
    %v434 = vadd.f32 %v432, %v433
    %v435 = vsel %vm135, %v110, 0.0
    %v436 = vsel %vm135, %v111, 0.0
    %v437 = vadd.f32 %v435, %v436
    %v438 = vsel %vm135, %v112, 0.0
    %v439 = vadd.f32 %v437, %v438
    %v440 = vsel %vm135, %v113, 0.0
    %v441 = vadd.f32 %v439, %v440
    %v442 = vsel %vm135, %v114, 0.0
    %v443 = vadd.f32 %v441, %v442
    %v444 = vsel %vm135, %v115, 0.0
    %v445 = vadd.f32 %v443, %v444
    %v446 = vsel %vm135, %v116, 0.0
    %v447 = vadd.f32 %v445, %v446
    %v448 = vsel %vm135, %v117, 0.0
    %v449 = vadd.f32 %v447, %v448
    %v450 = vrot.slane %v449, 4
    %v451 = vadd.f32 %v449, %v450
    %v452 = vrot.slane %v451, 2
    %v453 = vadd.f32 %v451, %v452
    %v454 = vrot.slane %v453, 1
    %v455 = vadd.f32 %v453, %v454
    %v456 = vsel %vm135, %v118, 0.0
    %v457 = vsel %vm135, %v119, 0.0
    %v458 = vadd.f32 %v456, %v457
    %v459 = vsel %vm135, %v120, 0.0
    %v460 = vadd.f32 %v458, %v459
    %v461 = vsel %vm135, %v121, 0.0
    %v462 = vadd.f32 %v460, %v461
    %v463 = vsel %vm135, %v122, 0.0
    %v464 = vadd.f32 %v462, %v463
    %v465 = vsel %vm135, %v123, 0.0
    %v466 = vadd.f32 %v464, %v465
    %v467 = vsel %vm135, %v124, 0.0
    %v468 = vadd.f32 %v466, %v467
    %v469 = vsel %vm135, %v125, 0.0
    %v470 = vadd.f32 %v468, %v469
    %v471 = vrot.slane %v470, 4
    %v472 = vadd.f32 %v470, %v471
    %v473 = vrot.slane %v472, 2
    %v474 = vadd.f32 %v472, %v473
    %v475 = vrot.slane %v474, 1
    %v476 = vadd.f32 %v474, %v475
    %v477 = vsel %vm135, %v126, 0.0
    %v478 = vsel %vm135, %v127, 0.0
    %v479 = vadd.f32 %v477, %v478
    %v480 = vsel %vm135, %v128, 0.0
    %v481 = vadd.f32 %v479, %v480
    %v482 = vsel %vm135, %v129, 0.0
    %v483 = vadd.f32 %v481, %v482
    %v484 = vsel %vm135, %v130, 0.0
    %v485 = vadd.f32 %v483, %v484
    %v486 = vsel %vm135, %v131, 0.0
    %v487 = vadd.f32 %v485, %v486
    %v488 = vsel %vm135, %v132, 0.0
    %v489 = vadd.f32 %v487, %v488
    %v490 = vsel %vm135, %v133, 0.0
    %v491 = vadd.f32 %v489, %v490
    %v492 = vrot.slane %v491, 4
    %v493 = vadd.f32 %v491, %v492
    %v494 = vrot.slane %v493, 2
    %v495 = vadd.f32 %v493, %v494
    %v496 = vrot.slane %v495, 1
    %v497 = vadd.f32 %v495, %v496
    %v506 = vsel %vm312, %v371, %v350
    %v507 = vsel %vm314, %v392, %v506
    %v508 = vsel %vm316, %v413, %v507
    %v509 = vsel %vm318, %v434, %v508
    %v510 = vsel %vm320, %v455, %v509
    %v511 = vsel %vm322, %v476, %v510
    %v512 = vsel %vm324, %v497, %v511
    %v514 = vadd.f32 %v329, %v512
    %515 = vst.msk [vmem:[#allocation3] sm:$0xff] %vm135, %v514
    // Predicated region
    $region34: #{tpu_custom_call.1} parent=1 // pred_check
      %p516 = pneg %p63
    $region35: #{tpu_custom_call.1} parent=1 // pred_check_branch
      %518 = sbr.rel (%p516) target = $region37
    $region36: #{tpu_custom_call.1} parent=1 // pred_region
      %v519 = vld [vmem:[#allocation2] sm:$0xff]
      %v520 = vld [vmem:[#allocation3] sm:$0xff]
      %v521 = vmul.f32 %v520, 0.015625
      %523 = vrot.lane.b32.xlu0 %v521, 64
      %v524 = vpop.permute.xlu0 %523
      %v526 = vsel %vm135, %v519, %v524
      %v527 = vpack.c.bf16 %v526, %v526
      %v528 = vld [vmem:[%s3] sm:$0x3]
      %v529 = vld [vmem:[%s3 + $0x2] sm:$0x1]
      %v530 = vld [vmem:[#allocation7] sm:$0xff]
      %v531 = vld [vmem:[#allocation7 + $0x8] sm:$0xff]
      %v532 = vld [vmem:[#allocation7 + $0x10] sm:$0xff]
      %v533 = vld [vmem:[#allocation7 + $0x18] sm:$0xff]
      %v534 = vld [vmem:[#allocation7 + $0x20] sm:$0xff]
      %v535 = vld [vmem:[#allocation7 + $0x28] sm:$0xff]
      %v536 = vld [vmem:[#allocation7 + $0x30] sm:$0xff]
      %v537 = vld [vmem:[#allocation7 + $0x38] sm:$0xff]
      %v538 = vld [vmem:[#allocation7 + $0x40] sm:$0xff]
      %v539 = vld [vmem:[#allocation7 + $0x48] sm:$0xff]
      %v540 = vld [vmem:[#allocation7 + $0x50] sm:$0xff]
      %v541 = vld [vmem:[#allocation7 + $0x58] sm:$0xff]
      %v542 = vld [vmem:[#allocation7 + $0x60] sm:$0xff]
      %v543 = vld [vmem:[#allocation7 + $0x68] sm:$0xff]
      %v544 = vld [vmem:[#allocation7 + $0x70] sm:$0xff]
      %v545 = vld [vmem:[#allocation7 + $0x78] sm:$0xff]
      %v547 = vlaneseq
      %v548 = vshrl.u32 %v547, 7
      %v549 = vsub.s32 0, %v548
      %v550 = vrot.slane %v528, %v549
      %v551 = vlaneseq
      %v552 = vshrl.u32 %v551, 7
      %v553 = vsub.s32 1, %v552
      %v554 = vrot.slane %v528, %v553
      %v573 = vunpack.c.l.b16 %v530
      %v574 = vunpack.c.h.b16 %v530
      %v575 = vunpack.c.l.b16 %v531
      %v576 = vunpack.c.h.b16 %v531
      %v577 = vunpack.c.l.b16 %v532
      %v578 = vunpack.c.h.b16 %v532
      %v579 = vunpack.c.l.b16 %v533
      %v580 = vunpack.c.h.b16 %v533
      %v581 = vunpack.c.l.b16 %v534
      %v582 = vunpack.c.h.b16 %v534
      %v583 = vunpack.c.l.b16 %v535
      %v584 = vunpack.c.h.b16 %v535
      %v585 = vunpack.c.l.b16 %v536
      %v586 = vunpack.c.h.b16 %v536
      %v587 = vunpack.c.l.b16 %v537
      %v588 = vunpack.c.h.b16 %v537
      %v589 = vunpack.c.l.b16 %v538
      %v590 = vunpack.c.h.b16 %v538
      %v591 = vunpack.c.l.b16 %v539
      %v592 = vunpack.c.h.b16 %v539
      %v593 = vunpack.c.l.b16 %v540
      %v594 = vunpack.c.h.b16 %v540
      %v595 = vunpack.c.l.b16 %v541
      %v596 = vunpack.c.h.b16 %v541
      %v597 = vunpack.c.l.b16 %v542
      %v598 = vunpack.c.h.b16 %v542
      %v599 = vunpack.c.l.b16 %v543
      %v600 = vunpack.c.h.b16 %v543
      %v601 = vunpack.c.l.b16 %v544
      %v602 = vunpack.c.h.b16 %v544
      %v603 = vunpack.c.l.b16 %v545
      %v604 = vunpack.c.h.b16 %v545
      %v605 = vpack.c.b16 %v575, %v573
      %v606 = vpack.c.b16 %v576, %v574
      %v607 = vpack.c.b16 %v579, %v577
      %v608 = vpack.c.b16 %v580, %v578
      %v609 = vpack.c.b16 %v583, %v581
      %v610 = vpack.c.b16 %v584, %v582
      %v611 = vpack.c.b16 %v587, %v585
      %v612 = vpack.c.b16 %v588, %v586
      %v613 = vpack.c.b16 %v591, %v589
      %v614 = vpack.c.b16 %v592, %v590
      %v615 = vpack.c.b16 %v595, %v593
      %v616 = vpack.c.b16 %v596, %v594
      %v617 = vpack.c.b16 %v599, %v597
      %v618 = vpack.c.b16 %v600, %v598
      %v619 = vpack.c.b16 %v603, %v601
      %v620 = vpack.c.b16 %v604, %v602
      %637 = vmatprep.subr.bf16.mxu0 %v606
      %638 = vmatpush1.bf16.msra.mxu0 %v605
      %639 = vmatprep.subr.bf16.mxu0 %v608
      %640 = vmatpush1.bf16.msra.mxu0 %v607
      %641 = vmatprep.subr.bf16.mxu0 %v610
      %642 = vmatpush1.bf16.msra.mxu0 %v609
      %643 = vmatprep.subr.bf16.mxu0 %v612
      %644 = vmatpush1.bf16.msra.mxu0 %v611
      %645 = vmatprep.subr.bf16.mxu0 %v614
      %646 = vmatpush1.bf16.msra.mxu0 %v613
      %647 = vmatprep.subr.bf16.mxu0 %v616
      %648 = vmatpush1.bf16.msra.mxu0 %v615
      %649 = vmatprep.subr.bf16.mxu0 %v618
      %650 = vmatpush1.bf16.msra.mxu0 %v617
      %651 = vmatprep.subr.bf16.mxu0 %v620
      %652 = vmatpush1.bf16.msra.mxu0 %v619
      %653 = vmatprep.subr.bf16.mxu0 0
      %654 = vmatpush1.bf16.msra.mxu0 0
      %655 = vmatprep.subr.bf16.mxu0 0
      %656 = vmatpush1.bf16.msra.mxu0 0
      %657 = vmatprep.subr.bf16.mxu0 0
      %658 = vmatpush1.bf16.msra.mxu0 0
      %659 = vmatprep.subr.bf16.mxu0 0
      %660 = vmatpush1.bf16.msra.mxu0 0
      %661 = vmatprep.subr.bf16.mxu0 0
      %662 = vmatpush1.bf16.msra.mxu0 0
      %663 = vmatprep.subr.bf16.mxu0 0
      %664 = vmatpush1.bf16.msra.mxu0 0
      %665 = vmatprep.subr.bf16.mxu0 0
      %666 = vmatpush1.bf16.msra.mxu0 0
      %667 = vmatprep.subr.bf16.mxu0 0
      %668 = vmatpush1.bf16.msra.mxu0 0
      %669 = vmatprep.mubr.bf16.mxu0 0
      %670 = vmatmul.mubr.bf16.gmra.mrb[0].mxu0 %v527
      %v671 = vpop.f32.mrb[0].mxu0
      %v672 = vadd.f32 %v550, %v671
      %v673 = vpop.f32.mrb[0].mxu0
      %v674 = vadd.f32 %v554, %v673
      %v675 = vpop.f32.mrb[0].mxu0
      %v676 = vpop.f32.mrb[0].mxu0
      %677 = vdwg.mxu0
      %v678 = vmax.f32 %v672, 0.0
      %v679 = vmax.f32 %v674, 0.0
      %v680 = vpack.c.bf16 %v678, %v678
      %v681 = vpack.c.bf16 %v679, %v679
      %v682 = vld [vmem:[#allocation9] sm:$0xf]
      %v683 = vld [vmem:[#allocation9 + $0x4] sm:$0xf]
      %v684 = vld [vmem:[#allocation9 + $0x8] sm:$0xf]
      %v685 = vld [vmem:[#allocation9 + $0xc] sm:$0xf]
      %v686 = vld [vmem:[#allocation9 + $0x10] sm:$0xf]
      %v687 = vld [vmem:[#allocation9 + $0x14] sm:$0xf]
      %v688 = vld [vmem:[#allocation9 + $0x18] sm:$0xf]
      %v689 = vld [vmem:[#allocation9 + $0x1c] sm:$0xf]
      %v690 = vld [vmem:[#allocation9 + $0x20] sm:$0xf]
      %v691 = vld [vmem:[#allocation9 + $0x24] sm:$0xf]
      %v692 = vld [vmem:[#allocation9 + $0x28] sm:$0xf]
      %v693 = vld [vmem:[#allocation9 + $0x2c] sm:$0xf]
      %v694 = vld [vmem:[#allocation9 + $0x30] sm:$0xf]
      %v695 = vld [vmem:[#allocation9 + $0x34] sm:$0xf]
      %v696 = vld [vmem:[#allocation9 + $0x38] sm:$0xf]
      %v697 = vld [vmem:[#allocation9 + $0x3c] sm:$0xf]
      %v698 = vld [vmem:[#allocation9 + $0x40] sm:$0xf]
      %v699 = vld [vmem:[#allocation9 + $0x44] sm:$0xf]
      %v700 = vld [vmem:[#allocation9 + $0x48] sm:$0xf]
      %v701 = vld [vmem:[#allocation9 + $0x4c] sm:$0xf]
      %v702 = vld [vmem:[#allocation9 + $0x50] sm:$0xf]
      %v703 = vld [vmem:[#allocation9 + $0x54] sm:$0xf]
      %v704 = vld [vmem:[#allocation9 + $0x58] sm:$0xf]
      %v705 = vld [vmem:[#allocation9 + $0x5c] sm:$0xf]
      %v706 = vld [vmem:[#allocation9 + $0x60] sm:$0xf]
      %v707 = vld [vmem:[#allocation9 + $0x64] sm:$0xf]
      %v708 = vld [vmem:[#allocation9 + $0x68] sm:$0xf]
      %v709 = vld [vmem:[#allocation9 + $0x6c] sm:$0xf]
      %v710 = vld [vmem:[#allocation9 + $0x70] sm:$0xf]
      %v711 = vld [vmem:[#allocation9 + $0x74] sm:$0xf]
      %v712 = vld [vmem:[#allocation9 + $0x78] sm:$0xf]
      %v713 = vld [vmem:[#allocation9 + $0x7c] sm:$0xf]
      %v715 = vlaneseq
      %v716 = vshrl.u32 %v715, 7
      %v717 = vsub.s32 0, %v716
      %v718 = vrot.slane %v529, %v717
      %v752 = vunpack.c.l.b16 %v682
      %v753 = vunpack.c.l.b16 %v683
      %v754 = vunpack.c.l.b16 %v684
      %v755 = vunpack.c.l.b16 %v685
      %v756 = vunpack.c.l.b16 %v686
      %v757 = vunpack.c.l.b16 %v687
      %v758 = vunpack.c.l.b16 %v688
      %v759 = vunpack.c.l.b16 %v689
      %v760 = vunpack.c.l.b16 %v690
      %v761 = vunpack.c.l.b16 %v691
      %v762 = vunpack.c.l.b16 %v692
      %v763 = vunpack.c.l.b16 %v693
      %v764 = vunpack.c.l.b16 %v694
      %v765 = vunpack.c.l.b16 %v695
      %v766 = vunpack.c.l.b16 %v696
      %v767 = vunpack.c.l.b16 %v697
      %v768 = vunpack.c.l.b16 %v698
      %v769 = vunpack.c.l.b16 %v699
      %v770 = vunpack.c.l.b16 %v700
      %v771 = vunpack.c.l.b16 %v701
      %v772 = vunpack.c.l.b16 %v702
      %v773 = vunpack.c.l.b16 %v703
      %v774 = vunpack.c.l.b16 %v704
      %v775 = vunpack.c.l.b16 %v705
      %v776 = vunpack.c.l.b16 %v706
      %v777 = vunpack.c.l.b16 %v707
      %v778 = vunpack.c.l.b16 %v708
      %v779 = vunpack.c.l.b16 %v709
      %v780 = vunpack.c.l.b16 %v710
      %v781 = vunpack.c.l.b16 %v711
      %v782 = vunpack.c.l.b16 %v712
      %v783 = vunpack.c.l.b16 %v713
      %v784 = vpack.c.b16 %v753, %v752
      %v785 = vpack.c.b16 %v755, %v754
      %v786 = vpack.c.b16 %v757, %v756
      %v787 = vpack.c.b16 %v759, %v758
      %v788 = vpack.c.b16 %v761, %v760
      %v789 = vpack.c.b16 %v763, %v762
      %v790 = vpack.c.b16 %v765, %v764
      %v791 = vpack.c.b16 %v767, %v766
      %v792 = vpack.c.b16 %v769, %v768
      %v793 = vpack.c.b16 %v771, %v770
      %v794 = vpack.c.b16 %v773, %v772
      %v795 = vpack.c.b16 %v775, %v774
      %v796 = vpack.c.b16 %v777, %v776
      %v797 = vpack.c.b16 %v779, %v778
      %v798 = vpack.c.b16 %v781, %v780
      %v799 = vpack.c.b16 %v783, %v782
      %816 = vmatprep.subr.bf16.mxu0 0
      %817 = vmatpush1.bf16.msra.mxu0 %v784
      %818 = vmatprep.subr.bf16.mxu0 0
      %819 = vmatpush1.bf16.msra.mxu0 %v785
      %820 = vmatprep.subr.bf16.mxu0 0
      %821 = vmatpush1.bf16.msra.mxu0 %v786
      %822 = vmatprep.subr.bf16.mxu0 0
      %823 = vmatpush1.bf16.msra.mxu0 %v787
      %824 = vmatprep.subr.bf16.mxu0 0
      %825 = vmatpush1.bf16.msra.mxu0 %v788
      %826 = vmatprep.subr.bf16.mxu0 0
      %827 = vmatpush1.bf16.msra.mxu0 %v789
      %828 = vmatprep.subr.bf16.mxu0 0
      %829 = vmatpush1.bf16.msra.mxu0 %v790
      %830 = vmatprep.subr.bf16.mxu0 0
      %831 = vmatpush1.bf16.msra.mxu0 %v791
      %832 = vmatprep.subr.bf16.mxu0 0
      %833 = vmatpush1.bf16.msra.mxu0 %v792
      %834 = vmatprep.subr.bf16.mxu0 0
      %835 = vmatpush1.bf16.msra.mxu0 %v793
      %836 = vmatprep.subr.bf16.mxu0 0
      %837 = vmatpush1.bf16.msra.mxu0 %v794
      %838 = vmatprep.subr.bf16.mxu0 0
      %839 = vmatpush1.bf16.msra.mxu0 %v795
      %840 = vmatprep.subr.bf16.mxu0 0
      %841 = vmatpush1.bf16.msra.mxu0 %v796
      %842 = vmatprep.subr.bf16.mxu0 0
      %843 = vmatpush1.bf16.msra.mxu0 %v797
      %844 = vmatprep.subr.bf16.mxu0 0
      %845 = vmatpush1.bf16.msra.mxu0 %v798
      %846 = vmatprep.subr.bf16.mxu0 0
      %847 = vmatpush1.bf16.msra.mxu0 %v799
      %848 = vmatprep.mubr.bf16.mxu0 %v681
      %849 = vmatmul.mubr.bf16.gmra.mrb[0].mxu0 %v680
      %v850 = vpop.f32.mrb[0].mxu0
      %v851 = vadd.f32 %v718, %v850
      %v852 = vpop.f32.mrb[0].mxu0
      %v853 = vpop.f32.mrb[0].mxu0
      %v854 = vpop.f32.mrb[0].mxu0
      %855 = vdwg.mxu0
      %856 = vmax.xlane.f32.xlu0 %v851
      %v857 = vpop.xlane.xlu0 %856
      %v858 = vlaneseq
      %v859 = vand.u32 %v858, 127
      %vm860 = vcmp.eq.f32.partialorder %v851, %v857
      %v861 = vsel %vm860, %v859, 128
      %v862 = vand.u32 %v861, 65535
      %v863 = vshra.s32 %v861, 16
      %v864 = vcvt.s32.f32 %v862
      %v865 = vcvt.s32.f32 %v863
      %866 = vmin.xlane.f32.xlu0 %v865
      %v867 = vpop.xlane.xlu0 %866
      %vm868 = vcmp.eq.f32.partialorder %v865, %v867
      %v869 = vsel %vm868, %v864, inf
      %870 = vmin.xlane.f32.xlu0 %v869
      %v871 = vpop.xlane.xlu0 %870
      %v872 = vcvt.f32.s32 %v871
      %v873 = vcvt.f32.s32 %v867
      %v874 = vshll.u32 %v873, 16
      %v875 = vadd.s32 %v874, %v872
      %vm876 = vcmp.eq.s32.totalorder %v859, %v875
      %v877 = vsel %vm876, 1, 0
      %v878 = vcvt.s32.f32 %v877
      %v879 = vpack.c.bf16 %v878, %v878
      %880 = vmatprep.subr.bf16.mxu0 0
      %881 = vmatpush1.bf16.xpose.msra.mxu0 %v784
      %882 = vmatprep.subr.bf16.mxu0 0
      %883 = vmatpush1.bf16.xpose.msra.mxu0 %v785
      %884 = vmatprep.subr.bf16.mxu0 0
      %885 = vmatpush1.bf16.xpose.msra.mxu0 %v786
      %886 = vmatprep.subr.bf16.mxu0 0
      %887 = vmatpush1.bf16.xpose.msra.mxu0 %v787
      %888 = vmatprep.subr.bf16.mxu0 0
      %889 = vmatpush1.bf16.xpose.msra.mxu0 %v788
      %890 = vmatprep.subr.bf16.mxu0 0
      %891 = vmatpush1.bf16.xpose.msra.mxu0 %v789
      %892 = vmatprep.subr.bf16.mxu0 0
      %893 = vmatpush1.bf16.xpose.msra.mxu0 %v790
      %894 = vmatprep.subr.bf16.mxu0 0
      %895 = vmatpush1.bf16.xpose.msra.mxu0 %v791
      %896 = vmatprep.subr.bf16.mxu0 0
      %897 = vmatpush1.bf16.xpose.msra.mxu0 %v792
      %898 = vmatprep.subr.bf16.mxu0 0
      %899 = vmatpush1.bf16.xpose.msra.mxu0 %v793
      %900 = vmatprep.subr.bf16.mxu0 0
      %901 = vmatpush1.bf16.xpose.msra.mxu0 %v794
      %902 = vmatprep.subr.bf16.mxu0 0
      %903 = vmatpush1.bf16.xpose.msra.mxu0 %v795
      %904 = vmatprep.subr.bf16.mxu0 0
      %905 = vmatpush1.bf16.xpose.msra.mxu0 %v796
      %906 = vmatprep.subr.bf16.mxu0 0
      %907 = vmatpush1.bf16.xpose.msra.mxu0 %v797
      %908 = vmatprep.subr.bf16.mxu0 0
      %909 = vmatpush1.bf16.xpose.msra.mxu0 %v798
      %910 = vmatprep.subr.bf16.mxu0 0
      %911 = vmatpush1.bf16.xpose.msra.mxu0 %v799
      %912 = vmatprep.mubr.bf16.mxu0 0
      %913 = vmatmul.mubr.bf16.gmra.mrb[0].mxu0 %v879
      %v914 = vpop.f32.mrb[0].mxu0
      %v915 = vadd.f32 0.0, %v914
      %v916 = vpop.f32.mrb[0].mxu0
      %v917 = vadd.f32 0.0, %v916
      %v918 = vpop.f32.mrb[0].mxu0
      %v919 = vpop.f32.mrb[0].mxu0
      %920 = vdwg.mxu0
      %v921 = vmul.f32 %v678, %v915
      %v922 = vmul.f32 %v679, %v917
      %v923 = vpack.c.bf16 %v921, %v921
      %v924 = vpack.c.bf16 %v922, %v922
      %925 = vmatprep.subr.bf16.mxu0 0
      %926 = vmatpush1.bf16.msra.mxu0 %v784
      %927 = vmatprep.subr.bf16.mxu0 0
      %928 = vmatpush1.bf16.msra.mxu0 %v785
      %929 = vmatprep.subr.bf16.mxu0 0
      %930 = vmatpush1.bf16.msra.mxu0 %v786
      %931 = vmatprep.subr.bf16.mxu0 0
      %932 = vmatpush1.bf16.msra.mxu0 %v787
      %933 = vmatprep.subr.bf16.mxu0 0
      %934 = vmatpush1.bf16.msra.mxu0 %v788
      %935 = vmatprep.subr.bf16.mxu0 0
      %936 = vmatpush1.bf16.msra.mxu0 %v789
      %937 = vmatprep.subr.bf16.mxu0 0
      %938 = vmatpush1.bf16.msra.mxu0 %v790
      %939 = vmatprep.subr.bf16.mxu0 0
      %940 = vmatpush1.bf16.msra.mxu0 %v791
      %941 = vmatprep.subr.bf16.mxu0 0
      %942 = vmatpush1.bf16.msra.mxu0 %v792
      %943 = vmatprep.subr.bf16.mxu0 0
      %944 = vmatpush1.bf16.msra.mxu0 %v793
      %945 = vmatprep.subr.bf16.mxu0 0
      %946 = vmatpush1.bf16.msra.mxu0 %v794
      %947 = vmatprep.subr.bf16.mxu0 0
      %948 = vmatpush1.bf16.msra.mxu0 %v795
      %949 = vmatprep.subr.bf16.mxu0 0
      %950 = vmatpush1.bf16.msra.mxu0 %v796
      %951 = vmatprep.subr.bf16.mxu0 0
      %952 = vmatpush1.bf16.msra.mxu0 %v797
      %953 = vmatprep.subr.bf16.mxu0 0
      %954 = vmatpush1.bf16.msra.mxu0 %v798
      %955 = vmatprep.subr.bf16.mxu0 0
      %956 = vmatpush1.bf16.msra.mxu0 %v799
      %957 = vmatprep.mubr.bf16.mxu0 %v924
      %958 = vmatmul.mubr.bf16.gmra.mrb[0].mxu0 %v923
      %v959 = vpop.f32.mrb[0].mxu0
      %v960 = vadd.f32 %v718, %v959
      %v961 = vpop.f32.mrb[0].mxu0
      %v962 = vpop.f32.mrb[0].mxu0
      %v963 = vpop.f32.mrb[0].mxu0
      %964 = vdwg.mxu0
      %965 = vst [vmem:[#allocation10] sm:$0xff] %v960
      %966 = vst [vmem:[#allocation11] sm:$0xff] %v851
    $region37: #{tpu_custom_call.1} parent=1 // pred_fallthru
      _
    // Predicated region
    $region38: #{tpu_custom_call.1} parent=1 // pred_check
      _
    $region39: #{tpu_custom_call.1} parent=1 // pred_check_branch
      %968 = sbr.rel (0) target = $region41
    $region40: #{tpu_custom_call.1} parent=1 // pred_region
      %s970 = ssub.s32 128, 128
      %971 = vsyncadd [#allocation6], %s970
      %s973 = sshll.u32 [#allocation10], 4
      %s974 = int_to_ptr.vmem [resolvable:$true] %s973
      %976 = dma.vmem_to_hbm [thread:$0]  %s974, 128, %s4, [#allocation6]
    $region41: #{tpu_custom_call.1} parent=1 // pred_fallthru
      _
    // Predicated region
    $region42: #{tpu_custom_call.1} parent=1 // pred_check
      _
    $region43: #{tpu_custom_call.1} parent=1 // pred_check_branch
      %978 = sbr.rel (0) target = $region45
    $region44: #{tpu_custom_call.1} parent=1 // pred_region
      %s980 = ssub.s32 128, 128
      %981 = vsyncadd [#allocation12], %s980
      %s983 = sshll.u32 [#allocation11], 4
      %s984 = int_to_ptr.vmem [resolvable:$true] %s983
      %986 = dma.vmem_to_hbm [thread:$0]  %s984, 128, %s5, [#allocation12]
    $region45: #{tpu_custom_call.1} parent=1 // pred_fallthru
      _
    // Predicated region
    $region46: #{tpu_custom_call.1} parent=1 // pred_check
      _
    $region47: #{tpu_custom_call.1} parent=1 // pred_check_branch
      %988 = sbr.rel (0) target = $region49
    $region48: #{tpu_custom_call.1} parent=1 // pred_region
      %989 = dma.done [#allocation6], 128
    $region49: #{tpu_custom_call.1} parent=1 // pred_fallthru
      _
    // Predicated region
    $region50: #{tpu_custom_call.1} parent=1 // pred_check
      _
    $region51: #{tpu_custom_call.1} parent=1 // pred_check_branch
      %991 = sbr.rel (0) target = $region53
    $region52: #{tpu_custom_call.1} parent=1 // pred_region
      %992 = dma.done [#allocation12], 128
    $region53: #{tpu_custom_call.1} parent=1 // pred_fallthru
      _
    %993 = vsyncpa [#allocation5], 1
    %994 = vsyncpa [#allocation8], 1
    %995 = vsyncpa [#allocation6], 1
    %996 = vsyncpa [#allocation12], 1

</llo_original>
